<compile_context>
chip_gen: v6e
topology: v6e:2x2x1
jax: 0.10.0
libtpu: 0.0.40
codegen_flags: <defaults>
</compile_context>

<pallas_src>
import functools

import jax
import jax.numpy as jnp
from jax.experimental import pallas as pl
from jax.experimental.pallas import tpu as pltpu


VMEM_SPEC = pl.BlockSpec(memory_space=pltpu.MemorySpace.VMEM)
SMEM_SPEC = pl.BlockSpec(memory_space=pltpu.MemorySpace.SMEM)

MIB = 1024 * 1024
RESIDENT_MAX_NODES = 2048          # n_pad <= this -> fully VMEM-resident path
X_RESIDENT_BYTES_BUDGET = 16 * MIB  # budget (x2 buffers) for holding X resident


def _round_up(x, m):
    return ((x + m - 1) // m) * m


# ----------------------------------------------------------------------------
# Resident propagation: whole multi-layer propagation in one pallas_call
# ----------------------------------------------------------------------------
def _resident_propagate_kernel(num_layers, a_ref, x_ref, z_ref):
    a = a_ref[...]                                   # (n_pad, n_pad) bf16
    x = x_ref[...]                                   # (n_pad, d_pad) f32
    acc = x                                          # layer-0 term (exact f32)
    for _ in range(num_layers):                      # static, small
        x = jnp.dot(a, x.astype(jnp.bfloat16),
                    preferred_element_type=jnp.float32)
        acc = acc + x
    z_ref[...] = acc * jnp.float32(1.0 / (num_layers + 1))


def _propagate_resident(a_bf16, x_pad, num_layers):
    n_pad, d_pad = x_pad.shape
    return pl.pallas_call(
        functools.partial(_resident_propagate_kernel, num_layers),
        out_shape=jax.ShapeDtypeStruct((n_pad, d_pad), jnp.float32),
        in_specs=[VMEM_SPEC, VMEM_SPEC],
        out_specs=VMEM_SPEC,
        compiler_params=pltpu.CompilerParams(vmem_limit_bytes=48 * MIB),
    )(a_bf16, x_pad)


# ----------------------------------------------------------------------------
# Tiled propagation: one pipelined SpMM pallas_call per layer (large graphs)
# ----------------------------------------------------------------------------
def _spmm_kernel(tk, x_resident, a_ref, x_ref, o_ref, acc_ref):
    k = pl.program_id(1)

    @pl.when(k == 0)
    def _():
        acc_ref[...] = jnp.zeros_like(acc_ref)

    if x_resident:
        start = pl.multiple_of(k * tk, tk)
        x_blk = x_ref[pl.ds(start, tk), :]           # X held resident in VMEM
    else:
        x_blk = x_ref[...]

    acc_ref[...] += jnp.dot(a_ref[...], x_blk,
                            preferred_element_type=jnp.float32)

    @pl.when(k == pl.num_programs(1) - 1)
    def _():
        o_ref[...] = acc_ref[...].astype(o_ref.dtype)   # bf16 writeback


def _spmm_layer(a_bf16, x_bf16, *, tm, tk, x_resident):
    n_pad = a_bf16.shape[0]
    d_pad = x_bf16.shape[1]
    grid = (n_pad // tm, n_pad // tk)

    if x_resident:
        x_spec = pl.BlockSpec((n_pad, d_pad), lambda i, k: (0, 0))
    else:
        x_spec = pl.BlockSpec((tk, d_pad), lambda i, k: (k, 0))

    a_bytes = 2 * tm * tk * 2                          # double-buffered bf16
    x_bytes = (2 * n_pad * d_pad * 2) if x_resident else (2 * tk * d_pad * 2)
    o_bytes = 2 * tm * d_pad * 2
    s_bytes = tm * d_pad * 4
    vmem_limit = min(48 * MIB,
                     max(32 * MIB,
                         int((a_bytes + x_bytes + o_bytes + s_bytes) * 1.25)))

    return pl.pallas_call(
        functools.partial(_spmm_kernel, tk, x_resident),
        out_shape=jax.ShapeDtypeStruct((n_pad, d_pad), jnp.bfloat16),
        grid_spec=pltpu.PrefetchScalarGridSpec(
            num_scalar_prefetch=0,
            grid=grid,
            in_specs=[
                pl.BlockSpec((tm, tk), lambda i, k: (i, k)),
                x_spec,
            ],
            out_specs=pl.BlockSpec((tm, d_pad), lambda i, k: (i, 0)),
            scratch_shapes=[pltpu.VMEM((tm, d_pad), jnp.float32)],
        ),
        compiler_params=pltpu.CompilerParams(
            dimension_semantics=("parallel", "arbitrary"),
            vmem_limit_bytes=vmem_limit,
        ),
    )(a_bf16, x_bf16)


def _pick_tiles(n):
    """Pick (tm, tk) with tm | tk (so n_pad overshoot <= tk) and modest waste."""
    n_unit = _round_up(n, 256)
    max_waste = max(int(n_unit * 0.25), 256)
    tk = 256
    for cand in (4096, 2048, 1024, 512, 256):
        if _round_up(n, cand) - n_unit <= max_waste:
            tk = cand
            break
    tm = max(tk // 4, 256)
    return tm, tk


def _propagate_tiled(a_bf16, x_pad, num_layers, *, tm, tk):
    n_pad, d_pad = x_pad.shape
    x_resident = (2 * n_pad * d_pad * 2) <= X_RESIDENT_BYTES_BUDGET
    acc = x_pad                                   # layer-0 term, exact f32
    x = x_pad.astype(jnp.bfloat16)                # single up-front cast
    for _ in range(num_layers):
        x = _spmm_layer(a_bf16, x, tm=tm, tk=tk, x_resident=x_resident)
        acc = acc + x.astype(jnp.float32)
    return acc / jnp.float32(num_layers + 1)


# ----------------------------------------------------------------------------
# Graph normalization (built directly at padded size, bf16, no intermediates)
# ----------------------------------------------------------------------------
def build_norm_adjacency(edge_index, num_nodes, n_pad):
    """Dense bf16 D^{-1/2} A D^{-1/2} + normalized self loop at (n_pad, n_pad).

    Degree is computed from the column index only (matches gcn_norm because
    callers pass both edge directions; one-directional edge_index would be
    normalized incorrectly).
    """
    row, col = edge_index[0], edge_index[1]
    deg = jnp.zeros((num_nodes,), jnp.float32).at[col].add(1.0)
    deg_inv_sqrt = jnp.where(deg > 0.0, deg ** -0.5, 0.0)
    norm = (deg_inv_sqrt[row] * deg_inv_sqrt[col]).astype(jnp.bfloat16)
    norm_self = (deg_inv_sqrt * deg_inv_sqrt).astype(jnp.bfloat16)

    a = jnp.zeros((n_pad, n_pad), jnp.bfloat16)
    a = a.at[col, row].add(norm)                  # out[i] += norm_ij * x[j]
    idx = jnp.arange(num_nodes)
    a = a.at[idx, idx].add(norm_self)             # normalized self loop
    return a


def propagate(edge_index, x0, num_layers):
    """z = mean_{l=0..num_layers} (A_hat^l @ x0)  -- generate_embedding_multi."""
    n, d = x0.shape
    d_pad = max(_round_up(d, 128), 128)
    n128 = max(_round_up(n, 128), 128)

    if n128 <= RESIDENT_MAX_NODES:
        n_pad = n128
        tm = tk = None
        resident = True
    else:
        tm, tk = _pick_tiles(n)
        n_pad = _round_up(n, tk)
        resident = False

    a_bf16 = build_norm_adjacency(edge_index, n, n_pad)
    x_pad = jnp.zeros((n_pad, d_pad), jnp.float32).at[:n, :d].set(
        x0.astype(jnp.float32))

    if resident:
        z = _propagate_resident(a_bf16, x_pad, num_layers)
    else:
        z = _propagate_tiled(a_bf16, x_pad, num_layers, tm=tm, tk=tk)
    return z[:n, :d]


# ----------------------------------------------------------------------------
# Fused loss kernels (scalar outputs in SMEM)
# ----------------------------------------------------------------------------
def _log_sigmoid(x):
    # matches torch.nn.functional.logsigmoid (numerically stable form)
    return jnp.minimum(x, 0.0) - jnp.log1p(jnp.exp(-jnp.abs(x)))


def _bpr_term(u, v, n, sgn, reg, flip):
    """Signed-BPR loss + L2 regularization -> scalar.

    flip=False:  logsigmoid((-sign(w)+2) * pos - neg)   (sBPR_loss_1)
    flip=True :  logsigmoid(neg - (sign(w)+2) * pos)    (sBPR_loss_2)
    returns -sBPR + reg * (||u||^2 + ||v||^2 + ||n||^2).
    """
    pos = jnp.sum(u * v, axis=1, keepdims=True)             # (B, 1)
    neg = jnp.sum(u[:, None, :] * n, axis=-1)               # (B, K)  (VPU path)
    if flip:
        arg = neg - (sgn + 2.0) * pos
    else:
        arg = (-sgn + 2.0) * pos - neg
    sbpr = jnp.sum(_log_sigmoid(arg))
    reg_loss = jnp.sum(u * u) + jnp.sum(v * v) + jnp.sum(n * n)
    return -sbpr + reg * reg_loss


def _cl_term(ua, ub, na, nb, tau):
    """InfoNCE-style contrastive term of PandGNN -> scalar.

    pos = diag(exp(norm(uA) @ norm(uB)^T / tau))
    neg = diag(exp(norm(uA) @ nA0^T / tau)) + diag(exp(norm(uB) @ nB0^T / tau))
    loss = sum(-log(pos / (pos + neg)))
    with nX0 = F.normalize(nX)[:, 0, :]  (F.normalize default dim=1 -> over K).
    """
    eps = 1e-12

    def norm_rows(x):                      # F.normalize(x, dim=1), 2-D
        nrm = jnp.sqrt(jnp.sum(x * x, axis=1, keepdims=True))
        return x / jnp.maximum(nrm, eps)

    def norm_axis1_take0(x):               # F.normalize(x, dim=1)[:, 0, :], 3-D
        nrm = jnp.sqrt(jnp.sum(x * x, axis=1, keepdims=True))       # (B, 1, D)
        return x[:, 0, :] / jnp.maximum(nrm[:, 0, :], eps)          # (B, D)

    uan = norm_rows(ua)
    ubn = norm_rows(ub)
    na0 = norm_axis1_take0(na)
    nb0 = norm_axis1_take0(nb)

    inv_tau = jnp.float32(1.0 / tau)
    pos = jnp.exp(jnp.sum(uan * ubn, axis=1, keepdims=True) * inv_tau)
    neg = (jnp.exp(jnp.sum(uan * na0, axis=1, keepdims=True) * inv_tau) +
           jnp.exp(jnp.sum(ubn * nb0, axis=1, keepdims=True) * inv_tau))
    return jnp.sum(-jnp.log(pos / (pos + neg)))


def _simple_loss_kernel(reg, w_ref, u_ref, v_ref, n_ref, out_ref):
    sgn = jnp.sign(w_ref[...])
    out_ref[0, 0] = _bpr_term(u_ref[...], v_ref[...], n_ref[...],
                              sgn, reg, flip=False)


def simple_bpr_loss(u_e, v_e, n_e, w2, reg):
    out = pl.pallas_call(
        functools.partial(_simple_loss_kernel, float(reg)),
        out_shape=jax.ShapeDtypeStruct((1, 1), jnp.float32),
        in_specs=[VMEM_SPEC] * 4,
        out_specs=SMEM_SPEC,
    )(w2, u_e, v_e, n_e)
    return out[0, 0]


def _fused_loss_kernel(reg, tau,
                       w_ref,
                       u1_ref, v1_ref, n1_ref,
                       u2_ref, v2_ref, n2_ref,
                       u3_ref, u4_ref, n3_ref, n4_ref,
                       u5_ref, u6_ref, n5_ref, n6_ref,
                       out_ref):
    sgn = jnp.sign(w_ref[...])
    loss1 = _bpr_term(u1_ref[...], v1_ref[...], n1_ref[...], sgn, reg, flip=False)
    loss2 = _bpr_term(u2_ref[...], v2_ref[...], n2_ref[...], sgn, reg, flip=True)
    pos_cl = _cl_term(u3_ref[...], u4_ref[...], n3_ref[...], n4_ref[...], tau)
    neg_cl = _cl_term(u5_ref[...], u6_ref[...], n5_ref[...], n6_ref[...], tau)
    out_ref[0, 0] = loss1 + loss2 + pos_cl + neg_cl


def fused_losses(w2, u1, v1, n1, u2, v2, n2,
                 u3, u4, n3, n4, u5, u6, n5, n6, reg, tau):
    out = pl.pallas_call(
        functools.partial(_fused_loss_kernel, float(reg), float(tau)),
        out_shape=jax.ShapeDtypeStruct((1, 1), jnp.float32),
        in_specs=[VMEM_SPEC] * 15,
        out_specs=SMEM_SPEC,
    )(w2, u1, v1, n1, u2, v2, n2, u3, u4, n3, n4, u5, u6, n5, n6)
    return out[0, 0]


# ----------------------------------------------------------------------------
# Glue (parameter init, forward orchestration)
# ----------------------------------------------------------------------------
class PandGNNPallas:
    def __init__(self, num_u, num_v, num_layers=2, dim=64, reg=1e-4, key=None):
        self.M = num_u
        self.N = num_v
        self.num_layers = num_layers
        self.embed_dim = dim
        self.reg = reg

        k1, k2, k3, k4 = jax.random.split(key, 4)

        def xavier_normal(k, shape):
            fan_out, fan_in = shape
            std = (2.0 / (fan_in + fan_out)) ** 0.5
            return std * jax.random.normal(k, shape, jnp.float32)

        self.E_pos = xavier_normal(k1, (num_u, dim))
        self.E_neg = xavier_normal(k2, (num_u, dim))
        self.E_item = xavier_normal(k3, (num_v, dim))
        self.E_item_n = xavier_normal(k4, (num_v, dim))
        # attn / q Linear layers exist in the PyTorch module but are unused in forward().

    def generate_embedding_multi(self, edge_index, e_user, e_item):
        x0 = jnp.concatenate([e_user, e_item], axis=0)          # (M+N, dim)
        return propagate(edge_index, x0, self.num_layers)

    def forward(self, u, v, w, n,
                data_p, data_n, data_p_1, data_p_2, data_n_1, data_n_2,
                epoch):
        w2 = w.reshape(-1, 1).astype(jnp.float32)
        if epoch % 10 != 1:
            emb_p = self.generate_embedding_multi(data_p, self.E_pos, self.E_item)
            return simple_bpr_loss(emb_p[u], emb_p[v], emb_p[n], w2, self.reg)
        else:
            emb_p = self.generate_embedding_multi(data_p, self.E_pos, self.E_item)
            emb_n = self.generate_embedding_multi(data_n, self.E_neg, self.E_item_n)
            emb_p1 = self.generate_embedding_multi(data_p_1, self.E_pos, self.E_item)
            emb_p2 = self.generate_embedding_multi(data_p_2, self.E_pos, self.E_item)
            emb_n1 = self.generate_embedding_multi(data_n_1, self.E_neg, self.E_item_n)
            emb_n2 = self.generate_embedding_multi(data_n_2, self.E_neg, self.E_item_n)

            # single fused loss kernel: two sBPR terms + two contrastive terms
            return fused_losses(
                w2,
                emb_p[u], emb_p[v], emb_p[n],
                emb_n[u], emb_n[v], emb_n[n],
                emb_p1[u], emb_p2[u], emb_p1[n], emb_p2[n],
                emb_n1[u], emb_n2[u], emb_n1[n], emb_n2[n],
                self.reg, 0.8)


# ----------------------------------------------------------------------------
# Example run
# ----------------------------------------------------------------------------
if __name__ == "__main__":
    key = jax.random.PRNGKey(0)
    param_key, data_key = jax.random.split(key)

    M, N, DIM, B, K, E = 8, 8, 64, 8, 4, 24   # small synthetic sizes
    model = PandGNNPallas(M, N, num_layers=2, dim=DIM, reg=1e-4, key=param_key)

    def random_bipartite_edges(k, num_edges):
        ku, ki = jax.random.split(k)
        users = jax.random.randint(ku, (num_edges,), 0, M)
        items = M + jax.random.randint(ki, (num_edges,), 0, N)
        row = jnp.concatenate([users, items])     # both directions (undirected)
        col = jnp.concatenate([items, users])
        return jnp.stack([row, col]).astype(jnp.int32)

    ks = jax.random.split(data_key, 10)
    data_p = random_bipartite_edges(ks[0], E)
    data_n = random_bipartite_edges(ks[1], E)
    data_p_1 = random_bipartite_edges(ks[2], E)
    data_p_2 = random_bipartite_edges(ks[3], E)
    data_n_1 = random_bipartite_edges(ks[4], E)
    data_n_2 = random_bipartite_edges(ks[5], E)

    u = jax.random.randint(ks[6], (B,), 0, M)
    v = M + jax.random.randint(ks[7], (B,), 0, N)
    n = M + jax.random.randint(ks[8], (B, K), 0, N)
    w = jax.random.randint(ks[9], (B,), -2, 5).astype(jnp.float32)

    # Branch 1: EPOCH % 10 != 1  (simple sBPR loss)
    loss_simple = model.forward(u, v, w, n,
                                data_p, data_n, data_p_1, data_p_2, data_n_1, data_n_2,
                                epoch=2)
    # Branch 2: EPOCH % 10 == 1  (two sBPR losses + contrastive losses, fused)
    loss_full = model.forward(u, v, w, n,
                              data_p, data_n, data_p_1, data_p_2, data_n_1, data_n_2,
                              epoch=11)

    jax.block_until_ready((loss_simple, loss_full))
    print("KERNEL_OK")
</pallas_src>

<mosaic_0001>
module attributes {stable_mosaic.version = 11 : i64} {
  func.func @_resident_propagate_kernel(%arg0: memref<128x128xbf16, #tpu.memory_space<vmem>>, %arg1: memref<128x128xf32, #tpu.memory_space<vmem>>, %arg2: memref<128x128xf32, #tpu.memory_space<vmem>>) attributes {dimension_semantics = [], scalar_prefetch = 0 : i64, scratch_operands = 0 : i64, tpu.core_type = #tpu.core_type<tc>} {
    %c0 = arith.constant 0 : index
    %c0_0 = arith.constant 0 : index
    %0 = vector.load %arg0[%c0, %c0_0] : memref<128x128xbf16, #tpu.memory_space<vmem>>, vector<128x128xbf16>
    %c0_1 = arith.constant 0 : index
    %c0_2 = arith.constant 0 : index
    %1 = vector.load %arg1[%c0_1, %c0_2] : memref<128x128xf32, #tpu.memory_space<vmem>>, vector<128x128xf32>
    %2 = arith.truncf %1 : vector<128x128xf32> to vector<128x128xbf16>
    %cst = arith.constant dense<0.000000e+00> : vector<128x128xf32>
    %3 = tpu.matmul %0, %2, %cst {dimension_numbers = #tpu.dot_dimension_numbers<[1], [0], [0], [1], [0, 0, 1, 1], [], []>} : vector<128x128xbf16>, vector<128x128xbf16>, vector<128x128xf32> -> vector<128x128xf32>
    %4 = arith.addf %1, %3 : vector<128x128xf32>
    %5 = arith.truncf %3 : vector<128x128xf32> to vector<128x128xbf16>
    %cst_3 = arith.constant dense<0.000000e+00> : vector<128x128xf32>
    %6 = tpu.matmul %0, %5, %cst_3 {dimension_numbers = #tpu.dot_dimension_numbers<[1], [0], [0], [1], [0, 0, 1, 1], [], []>} : vector<128x128xbf16>, vector<128x128xbf16>, vector<128x128xf32> -> vector<128x128xf32>
    %7 = arith.addf %4, %6 : vector<128x128xf32>
    %cst_4 = arith.constant 0.333333343 : f32
    %8 = vector.broadcast %cst_4 : f32 to vector<128x128xf32>
    %9 = arith.mulf %7, %8 : vector<128x128xf32>
    %c0_5 = arith.constant 0 : index
    %c0_6 = arith.constant 0 : index
    %10 = vector.load %arg2[%c0_5, %c0_6] : memref<128x128xf32, #tpu.memory_space<vmem>>, vector<128x128xf32>
    tpu.vector_store %arg2[%c0_5, %c0_6], %9 {strides = array<i32>} : memref<128x128xf32, #tpu.memory_space<vmem>>, vector<128x128xf32>,
    return
  }
}

</mosaic_0001>

<llo_original>
// kernel: tpu_custom_call.1
$region0: #{tpu_custom_call.1}
  #allocation0 [shape = 'u32[]', space=smem, size = 0x4, offset = 0x4, fixed_abs, tag = 'smem constant byte address 0x4 - core index']
  #allocation1 [shape = 'u32[144,128]{1,0:T(1,128)}', space=vmem, size = 0x12000, scoped, tag = 'internal scratch']
  %s0 = inlined_call_operand.hbm [shape: bf16[128,128], index: 0, kind: input, shape index: {}]
  %s1 = inlined_call_operand.hbm [shape: f32[128,128], index: 1, kind: input, shape index: {}]
  %s2 = inlined_call_operand.hbm [shape: f32[128,128], index: 2, kind: output, shape index: {}]
  %s3 = sld [smem:[#allocation0]]
  $region26: #{tpu_custom_call.1} parent=0
    _
  %s5 = ssub.s32 1, %s3
  %s6 = scalar_select 0, %s5, %s3
  $region1: #{tpu_custom_call.1} parent=0
    #allocation2 [shape = 'u8[32768]{0}', space=vmem, size = 0x8000, scoped, tag = 'input window, operand 0, single buffered']
    #allocation3 [shape = 's32[1]{0}', space=sflag, size = 0x4, scoped, tag = 'scoped memory for tpu_custom_call.1']
    #allocation4 [shape = 's32[1]{0}', space=sflag, size = 0x4, scoped, tag = 'scoped memory for tpu_custom_call.1']
    #allocation5 [shape = 'u8[65536]{0}', space=vmem, size = 0x10000, scoped, tag = 'input window, operand 1, single buffered']
    #allocation6 [shape = 's32[1]{0}', space=sflag, size = 0x4, scoped, tag = 'scoped memory for tpu_custom_call.1']
    #allocation7 [shape = 'u8[65536]{0}', space=vmem, size = 0x10000, scoped, tag = 'output window, operand 0, single buffered']
    %7 = vsyncpa [#allocation3], 0
    %8 = vsyncpa [#allocation6], 0
    %9 = vsyncpa [#allocation4], 0
    // Predicated region
    $region2: #{tpu_custom_call.1} parent=1 // pred_check
      _
    $region3: #{tpu_custom_call.1} parent=1 // pred_check_branch
      %11 = sbr.rel (0) target = $region5
    $region4: #{tpu_custom_call.1} parent=1 // pred_region
      %s13 = ssub.s32 1024, 1024
      %14 = vsyncadd [#allocation3], %s13
      %s15 = sshll.u32 [#allocation2], 4
      %s16 = int_to_ptr.vmem [resolvable:$true] %s15
      %21 = dma.hbm_to_vmem [thread:$0]  %s0, 1024, %s16, [#allocation3], 64, 64, 4
    $region5: #{tpu_custom_call.1} parent=1 // pred_fallthru
      _
    // Predicated region
    $region6: #{tpu_custom_call.1} parent=1 // pred_check
      _
    $region7: #{tpu_custom_call.1} parent=1 // pred_check_branch
      %23 = sbr.rel (0) target = $region9
    $region8: #{tpu_custom_call.1} parent=1 // pred_region
      %s25 = ssub.s32 2048, 2048
      %26 = vsyncadd [#allocation6], %s25
      %s27 = sshll.u32 [#allocation5], 4
      %s28 = int_to_ptr.vmem [resolvable:$true] %s27
      %33 = dma.hbm_to_vmem [thread:$0]  %s1, 2048, %s28, [#allocation6], 128, 128, 8
    $region9: #{tpu_custom_call.1} parent=1 // pred_fallthru
      _
    // Predicated region
    $region10: #{tpu_custom_call.1} parent=1 // pred_check
      _
    $region11: #{tpu_custom_call.1} parent=1 // pred_check_branch
      %35 = sbr.rel (0) target = $region13
    $region12: #{tpu_custom_call.1} parent=1 // pred_region
      %36 = dma.done [#allocation3], 1024
    $region13: #{tpu_custom_call.1} parent=1 // pred_fallthru
      _
    // Predicated region
    $region14: #{tpu_custom_call.1} parent=1 // pred_check
      _
    $region15: #{tpu_custom_call.1} parent=1 // pred_check_branch
      %38 = sbr.rel (0) target = $region17
    $region16: #{tpu_custom_call.1} parent=1 // pred_region
      %39 = dma.done [#allocation6], 2048
    $region17: #{tpu_custom_call.1} parent=1 // pred_fallthru
      _
    %v41 = vld [vmem:[#allocation2] sm:$0xf]
    %v42 = vld [vmem:[#allocation2 + $0x4] sm:$0xf]
    %v43 = vld [vmem:[#allocation2 + $0x8] sm:$0xf]
    %v44 = vld [vmem:[#allocation2 + $0xc] sm:$0xf]
    %v45 = vld [vmem:[#allocation2 + $0x10] sm:$0xf]
    %v46 = vld [vmem:[#allocation2 + $0x14] sm:$0xf]
    %v47 = vld [vmem:[#allocation2 + $0x18] sm:$0xf]
    %v48 = vld [vmem:[#allocation2 + $0x1c] sm:$0xf]
    %v49 = vld [vmem:[#allocation2 + $0x20] sm:$0xf]
    %v50 = vld [vmem:[#allocation2 + $0x24] sm:$0xf]
    %v51 = vld [vmem:[#allocation2 + $0x28] sm:$0xf]
    %v52 = vld [vmem:[#allocation2 + $0x2c] sm:$0xf]
    %v53 = vld [vmem:[#allocation2 + $0x30] sm:$0xf]
    %v54 = vld [vmem:[#allocation2 + $0x34] sm:$0xf]
    %v55 = vld [vmem:[#allocation2 + $0x38] sm:$0xf]
    %v56 = vld [vmem:[#allocation2 + $0x3c] sm:$0xf]
    %v57 = vld [vmem:[#allocation5] sm:$0xff]
    %v58 = vld [vmem:[#allocation5 + $0x8] sm:$0xff]
    %v59 = vld [vmem:[#allocation5 + $0x10] sm:$0xff]
    %v60 = vld [vmem:[#allocation5 + $0x18] sm:$0xff]
    %v61 = vld [vmem:[#allocation5 + $0x20] sm:$0xff]
    %v62 = vld [vmem:[#allocation5 + $0x28] sm:$0xff]
    %v63 = vld [vmem:[#allocation5 + $0x30] sm:$0xff]
    %v64 = vld [vmem:[#allocation5 + $0x38] sm:$0xff]
    %v65 = vld [vmem:[#allocation5 + $0x40] sm:$0xff]
    %v66 = vld [vmem:[#allocation5 + $0x48] sm:$0xff]
    %v67 = vld [vmem:[#allocation5 + $0x50] sm:$0xff]
    %v68 = vld [vmem:[#allocation5 + $0x58] sm:$0xff]
    %v69 = vld [vmem:[#allocation5 + $0x60] sm:$0xff]
    %v70 = vld [vmem:[#allocation5 + $0x68] sm:$0xff]
    %v71 = vld [vmem:[#allocation5 + $0x70] sm:$0xff]
    %v72 = vld [vmem:[#allocation5 + $0x78] sm:$0xff]
    %v73 = vpack.c.bf16 %v58, %v57
    %v74 = vpack.c.bf16 %v60, %v59
    %v75 = vpack.c.bf16 %v62, %v61
    %v76 = vpack.c.bf16 %v64, %v63
    %v77 = vpack.c.bf16 %v66, %v65
    %v78 = vpack.c.bf16 %v68, %v67
    %v79 = vpack.c.bf16 %v70, %v69
    %v80 = vpack.c.bf16 %v72, %v71
    %v97 = vunpack.c.l.b16 %v41
    %v98 = vunpack.c.l.b16 %v42
    %v99 = vunpack.c.l.b16 %v43
    %v100 = vunpack.c.l.b16 %v44
    %v101 = vunpack.c.l.b16 %v45
    %v102 = vunpack.c.l.b16 %v46
    %v103 = vunpack.c.l.b16 %v47
    %v104 = vunpack.c.l.b16 %v48
    %v105 = vunpack.c.l.b16 %v49
    %v106 = vunpack.c.l.b16 %v50
    %v107 = vunpack.c.l.b16 %v51
    %v108 = vunpack.c.l.b16 %v52
    %v109 = vunpack.c.l.b16 %v53
    %v110 = vunpack.c.l.b16 %v54
    %v111 = vunpack.c.l.b16 %v55
    %v112 = vunpack.c.l.b16 %v56
    %v113 = vpack.c.b16 %v98, %v97
    %v114 = vpack.c.b16 %v100, %v99
    %v115 = vpack.c.b16 %v102, %v101
    %v116 = vpack.c.b16 %v104, %v103
    %v117 = vpack.c.b16 %v106, %v105
    %v118 = vpack.c.b16 %v108, %v107
    %v119 = vpack.c.b16 %v110, %v109
    %v120 = vpack.c.b16 %v112, %v111
    %129 = vmatprep.subr.bf16.mxu0 0
    %130 = vmatpush1.bf16.msra.mxu0 %v80
    %131 = vmatprep.subr.bf16.mxu0 0
    %132 = vmatpush1.bf16.msra.mxu0 %v79
    %133 = vmatprep.subr.bf16.mxu0 0
    %134 = vmatpush1.bf16.msra.mxu0 %v78
    %135 = vmatprep.subr.bf16.mxu0 0
    %136 = vmatpush1.bf16.msra.mxu0 %v77
    %137 = vmatprep.subr.bf16.mxu0 0
    %138 = vmatpush1.bf16.msra.mxu0 %v76
    %139 = vmatprep.subr.bf16.mxu0 0
    %140 = vmatpush1.bf16.msra.mxu0 %v75
    %141 = vmatprep.subr.bf16.mxu0 0
    %142 = vmatpush1.bf16.msra.mxu0 %v74
    %143 = vmatprep.subr.bf16.mxu0 0
    %144 = vmatpush1.bf16.msra.mxu0 %v73
    %145 = vmatprep.subr.bf16.mxu0 0
    %146 = vmatpush2.bf16.msra.mxu0 0
    %147 = vmatprep.subr.bf16.mxu0 0
    %148 = vmatpush2.bf16.msra.mxu0 0
    %149 = vmatprep.subr.bf16.mxu0 0
    %150 = vmatpush2.bf16.msra.mxu0 0
    %151 = vmatprep.subr.bf16.mxu0 0
    %152 = vmatpush2.bf16.msra.mxu0 0
    %153 = vmatprep.subr.bf16.mxu0 0
    %154 = vmatpush2.bf16.msra.mxu0 0
    %155 = vmatprep.subr.bf16.mxu0 0
    %156 = vmatpush2.bf16.msra.mxu0 0
    %157 = vmatprep.subr.bf16.mxu0 0
    %158 = vmatpush2.bf16.msra.mxu0 0
    %159 = vmatprep.subr.bf16.mxu0 0
    %160 = vmatpush2.bf16.msra.mxu0 0
    %161 = vmatprep.mubr.bf16.mxu0 0
    %162 = vmatmul.mubr.bf16.gmra.mxu0 %v113
    %v163 = vpop.f32.mrf.mxu0
    %v164 = vadd.f32 0.0, %v163
    %v165 = vpop.f32.mrf.mxu0
    %v166 = vpop.f32.mrf.mxu0
    %v167 = vadd.f32 0.0, %v166
    %v168 = vpop.f32.mrf.mxu0
    %169 = vmatprep.mubr.bf16.mxu0 0
    %170 = vmatmul.mubr.bf16.gmra.mxu0 %v114
    %v171 = vpop.f32.mrf.mxu0
    %v172 = vadd.f32 0.0, %v171
    %v173 = vpop.f32.mrf.mxu0
    %v174 = vpop.f32.mrf.mxu0
    %v175 = vadd.f32 0.0, %v174
    %v176 = vpop.f32.mrf.mxu0
    %177 = vmatprep.mubr.bf16.mxu0 0
    %178 = vmatmul.mubr.bf16.gmra.mxu0 %v115
    %v179 = vpop.f32.mrf.mxu0
    %v180 = vadd.f32 0.0, %v179
    %v181 = vpop.f32.mrf.mxu0
    %v182 = vpop.f32.mrf.mxu0
    %v183 = vadd.f32 0.0, %v182
    %v184 = vpop.f32.mrf.mxu0
    %185 = vmatprep.mubr.bf16.mxu0 0
    %186 = vmatmul.mubr.bf16.gmra.mxu0 %v116
    %v187 = vpop.f32.mrf.mxu0
    %v188 = vadd.f32 0.0, %v187
    %v189 = vpop.f32.mrf.mxu0
    %v190 = vpop.f32.mrf.mxu0
    %v191 = vadd.f32 0.0, %v190
    %v192 = vpop.f32.mrf.mxu0
    %193 = vmatprep.mubr.bf16.mxu0 0
    %194 = vmatmul.mubr.bf16.gmra.mxu0 %v117
    %v195 = vpop.f32.mrf.mxu0
    %v196 = vadd.f32 0.0, %v195
    %v197 = vpop.f32.mrf.mxu0
    %v198 = vpop.f32.mrf.mxu0
    %v199 = vadd.f32 0.0, %v198
    %v200 = vpop.f32.mrf.mxu0
    %201 = vmatprep.mubr.bf16.mxu0 0
    %202 = vmatmul.mubr.bf16.gmra.mxu0 %v118
    %v203 = vpop.f32.mrf.mxu0
    %v204 = vadd.f32 0.0, %v203
    %v205 = vpop.f32.mrf.mxu0
    %v206 = vpop.f32.mrf.mxu0
    %v207 = vadd.f32 0.0, %v206
    %v208 = vpop.f32.mrf.mxu0
    %209 = vmatprep.mubr.bf16.mxu0 0
    %210 = vmatmul.mubr.bf16.gmra.mxu0 %v119
    %v211 = vpop.f32.mrf.mxu0
    %v212 = vadd.f32 0.0, %v211
    %v213 = vpop.f32.mrf.mxu0
    %v214 = vpop.f32.mrf.mxu0
    %v215 = vadd.f32 0.0, %v214
    %v216 = vpop.f32.mrf.mxu0
    %217 = vmatprep.mubr.bf16.mxu0 0
    %218 = vmatmul.mubr.bf16.gmra.mxu0 %v120
    %v219 = vpop.f32.mrf.mxu0
    %v220 = vadd.f32 0.0, %v219
    %v221 = vpop.f32.mrf.mxu0
    %v222 = vpop.f32.mrf.mxu0
    %v223 = vadd.f32 0.0, %v222
    %v224 = vpop.f32.mrf.mxu0
    %225 = vdwg.mxu0
    %v226 = vadd.f32 %v57, %v164
    %v227 = vadd.f32 %v58, %v167
    %v228 = vadd.f32 %v59, %v172
    %v229 = vadd.f32 %v60, %v175
    %v230 = vadd.f32 %v61, %v180
    %v231 = vadd.f32 %v62, %v183
    %v232 = vadd.f32 %v63, %v188
    %v233 = vadd.f32 %v64, %v191
    %v234 = vadd.f32 %v65, %v196
    %v235 = vadd.f32 %v66, %v199
    %v236 = vadd.f32 %v67, %v204
    %v237 = vadd.f32 %v68, %v207
    %v238 = vadd.f32 %v69, %v212
    %v239 = vadd.f32 %v70, %v215
    %v240 = vadd.f32 %v71, %v220
    %v241 = vadd.f32 %v72, %v223
    %v242 = vpack.c.bf16 %v167, %v164
    %v243 = vpack.c.bf16 %v175, %v172
    %v244 = vpack.c.bf16 %v183, %v180
    %v245 = vpack.c.bf16 %v191, %v188
    %v246 = vpack.c.bf16 %v199, %v196
    %v247 = vpack.c.bf16 %v207, %v204
    %v248 = vpack.c.bf16 %v215, %v212
    %v249 = vpack.c.bf16 %v223, %v220
    %250 = vmatprep.subr.bf16.mxu0 0
    %251 = vmatpush1.bf16.msra.mxu0 %v249
    %252 = vmatprep.subr.bf16.mxu0 0
    %253 = vmatpush1.bf16.msra.mxu0 %v248
    %254 = vmatprep.subr.bf16.mxu0 0
    %255 = vmatpush1.bf16.msra.mxu0 %v247
    %256 = vmatprep.subr.bf16.mxu0 0
    %257 = vmatpush1.bf16.msra.mxu0 %v246
    %258 = vmatprep.subr.bf16.mxu0 0
    %259 = vmatpush1.bf16.msra.mxu0 %v245
    %260 = vmatprep.subr.bf16.mxu0 0
    %261 = vmatpush1.bf16.msra.mxu0 %v244
    %262 = vmatprep.subr.bf16.mxu0 0
    %263 = vmatpush1.bf16.msra.mxu0 %v243
    %264 = vmatprep.subr.bf16.mxu0 0
    %265 = vmatpush1.bf16.msra.mxu0 %v242
    %266 = vmatprep.subr.bf16.mxu0 0
    %267 = vmatpush2.bf16.msra.mxu0 0
    %268 = vmatprep.subr.bf16.mxu0 0
    %269 = vmatpush2.bf16.msra.mxu0 0
    %270 = vmatprep.subr.bf16.mxu0 0
    %271 = vmatpush2.bf16.msra.mxu0 0
    %272 = vmatprep.subr.bf16.mxu0 0
    %273 = vmatpush2.bf16.msra.mxu0 0
    %274 = vmatprep.subr.bf16.mxu0 0
    %275 = vmatpush2.bf16.msra.mxu0 0
    %276 = vmatprep.subr.bf16.mxu0 0
    %277 = vmatpush2.bf16.msra.mxu0 0
    %278 = vmatprep.subr.bf16.mxu0 0
    %279 = vmatpush2.bf16.msra.mxu0 0
    %280 = vmatprep.subr.bf16.mxu0 0
    %281 = vmatpush2.bf16.msra.mxu0 0
    %282 = vmatprep.mubr.bf16.mxu0 0
    %283 = vmatmul.mubr.bf16.gmra.mxu0 %v113
    %v284 = vpop.f32.mrf.mxu0
    %v285 = vadd.f32 0.0, %v284
    %v286 = vpop.f32.mrf.mxu0
    %v287 = vpop.f32.mrf.mxu0
    %v288 = vadd.f32 0.0, %v287
    %v289 = vpop.f32.mrf.mxu0
    %290 = vmatprep.mubr.bf16.mxu0 0
    %291 = vmatmul.mubr.bf16.gmra.mxu0 %v114
    %v292 = vpop.f32.mrf.mxu0
    %v293 = vadd.f32 0.0, %v292
    %v294 = vpop.f32.mrf.mxu0
    %v295 = vpop.f32.mrf.mxu0
    %v296 = vadd.f32 0.0, %v295
    %v297 = vpop.f32.mrf.mxu0
    %298 = vmatprep.mubr.bf16.mxu0 0
    %299 = vmatmul.mubr.bf16.gmra.mxu0 %v115
    %v300 = vpop.f32.mrf.mxu0
    %v301 = vadd.f32 0.0, %v300
    %v302 = vpop.f32.mrf.mxu0
    %v303 = vpop.f32.mrf.mxu0
    %v304 = vadd.f32 0.0, %v303
    %v305 = vpop.f32.mrf.mxu0
    %306 = vmatprep.mubr.bf16.mxu0 0
    %307 = vmatmul.mubr.bf16.gmra.mxu0 %v116
    %v308 = vpop.f32.mrf.mxu0
    %v309 = vadd.f32 0.0, %v308
    %v310 = vpop.f32.mrf.mxu0
    %v311 = vpop.f32.mrf.mxu0
    %v312 = vadd.f32 0.0, %v311
    %v313 = vpop.f32.mrf.mxu0
    %314 = vmatprep.mubr.bf16.mxu0 0
    %315 = vmatmul.mubr.bf16.gmra.mxu0 %v117
    %v316 = vpop.f32.mrf.mxu0
    %v317 = vadd.f32 0.0, %v316
    %v318 = vpop.f32.mrf.mxu0
    %v319 = vpop.f32.mrf.mxu0
    %v320 = vadd.f32 0.0, %v319
    %v321 = vpop.f32.mrf.mxu0
    %322 = vmatprep.mubr.bf16.mxu0 0
    %323 = vmatmul.mubr.bf16.gmra.mxu0 %v118
    %v324 = vpop.f32.mrf.mxu0
    %v325 = vadd.f32 0.0, %v324
    %v326 = vpop.f32.mrf.mxu0
    %v327 = vpop.f32.mrf.mxu0
    %v328 = vadd.f32 0.0, %v327
    %v329 = vpop.f32.mrf.mxu0
    %330 = vmatprep.mubr.bf16.mxu0 0
    %331 = vmatmul.mubr.bf16.gmra.mxu0 %v119
    %v332 = vpop.f32.mrf.mxu0
    %v333 = vadd.f32 0.0, %v332
    %v334 = vpop.f32.mrf.mxu0
    %v335 = vpop.f32.mrf.mxu0
    %v336 = vadd.f32 0.0, %v335
    %v337 = vpop.f32.mrf.mxu0
    %338 = vmatprep.mubr.bf16.mxu0 0
    %339 = vmatmul.mubr.bf16.gmra.mxu0 %v120
    %v340 = vpop.f32.mrf.mxu0
    %v341 = vadd.f32 0.0, %v340
    %v342 = vpop.f32.mrf.mxu0
    %v343 = vpop.f32.mrf.mxu0
    %v344 = vadd.f32 0.0, %v343
    %v345 = vpop.f32.mrf.mxu0
    %346 = vdwg.mxu0
    %v347 = vadd.f32 %v226, %v285
    %v348 = vadd.f32 %v227, %v288
    %v349 = vadd.f32 %v228, %v293
    %v350 = vadd.f32 %v229, %v296
    %v351 = vadd.f32 %v230, %v301
    %v352 = vadd.f32 %v231, %v304
    %v353 = vadd.f32 %v232, %v309
    %v354 = vadd.f32 %v233, %v312
    %v355 = vadd.f32 %v234, %v317
    %v356 = vadd.f32 %v235, %v320
    %v357 = vadd.f32 %v236, %v325
    %v358 = vadd.f32 %v237, %v328
    %v359 = vadd.f32 %v238, %v333
    %v360 = vadd.f32 %v239, %v336
    %v361 = vadd.f32 %v240, %v341
    %v362 = vadd.f32 %v241, %v344
    %v363 = vmul.f32 %v347, 0.33333334
    %v364 = vmul.f32 %v348, 0.33333334
    %v365 = vmul.f32 %v349, 0.33333334
    %v366 = vmul.f32 %v350, 0.33333334
    %v367 = vmul.f32 %v351, 0.33333334
    %v368 = vmul.f32 %v352, 0.33333334
    %v369 = vmul.f32 %v353, 0.33333334
    %v370 = vmul.f32 %v354, 0.33333334
    %v371 = vmul.f32 %v355, 0.33333334
    %v372 = vmul.f32 %v356, 0.33333334
    %v373 = vmul.f32 %v357, 0.33333334
    %v374 = vmul.f32 %v358, 0.33333334
    %v375 = vmul.f32 %v359, 0.33333334
    %v376 = vmul.f32 %v360, 0.33333334
    %v377 = vmul.f32 %v361, 0.33333334
    %v378 = vmul.f32 %v362, 0.33333334
    %379 = vst [vmem:[#allocation7] sm:$0xff] %v363
    %380 = vst [vmem:[#allocation7 + $0x8] sm:$0xff] %v364
    %381 = vst [vmem:[#allocation7 + $0x10] sm:$0xff] %v365
    %382 = vst [vmem:[#allocation7 + $0x18] sm:$0xff] %v366
    %383 = vst [vmem:[#allocation7 + $0x20] sm:$0xff] %v367
    %384 = vst [vmem:[#allocation7 + $0x28] sm:$0xff] %v368
    %385 = vst [vmem:[#allocation7 + $0x30] sm:$0xff] %v369
    %386 = vst [vmem:[#allocation7 + $0x38] sm:$0xff] %v370
    %387 = vst [vmem:[#allocation7 + $0x40] sm:$0xff] %v371
    %388 = vst [vmem:[#allocation7 + $0x48] sm:$0xff] %v372
    %389 = vst [vmem:[#allocation7 + $0x50] sm:$0xff] %v373
    %390 = vst [vmem:[#allocation7 + $0x58] sm:$0xff] %v374
    %391 = vst [vmem:[#allocation7 + $0x60] sm:$0xff] %v375
    %392 = vst [vmem:[#allocation7 + $0x68] sm:$0xff] %v376
    %393 = vst [vmem:[#allocation7 + $0x70] sm:$0xff] %v377
    %394 = vst [vmem:[#allocation7 + $0x78] sm:$0xff] %v378
    // Predicated region
    $region18: #{tpu_custom_call.1} parent=1 // pred_check
      _
    $region19: #{tpu_custom_call.1} parent=1 // pred_check_branch
      %396 = sbr.rel (0) target = $region21
    $region20: #{tpu_custom_call.1} parent=1 // pred_region
      %s398 = ssub.s32 2048, 2048
      %399 = vsyncadd [#allocation4], %s398
      %s400 = sshll.u32 [#allocation7], 4
      %s401 = int_to_ptr.vmem [resolvable:$true] %s400
      %406 = dma.vmem_to_hbm [thread:$0]  %s401, 2048, %s2, [#allocation4], 128, 128, 8
    $region21: #{tpu_custom_call.1} parent=1 // pred_fallthru
      _
    // Predicated region
    $region22: #{tpu_custom_call.1} parent=1 // pred_check
      _
    $region23: #{tpu_custom_call.1} parent=1 // pred_check_branch
      %408 = sbr.rel (0) target = $region25
    $region24: #{tpu_custom_call.1} parent=1 // pred_region
      %409 = dma.done [#allocation4], 2048
    $region25: #{tpu_custom_call.1} parent=1 // pred_fallthru
      _
    %410 = vsyncpa [#allocation3], 1
    %411 = vsyncpa [#allocation6], 1
    %412 = vsyncpa [#allocation4], 1

</llo_original>
